<compile_context>
chip_gen: v7x
topology: tpu7x:2x2x1
jax: 0.10.0
libtpu: 0.0.40
codegen_flags: <defaults>
</compile_context>

<pallas_src>
import math

import jax
import jax.numpy as jnp
from jax.experimental import pallas as pl
from jax.experimental.pallas import tpu as pltpu


def _pos_enc_kernel(x_ref, emb_ref, o_ref):
    # x_ref:   (TB, C_in,     THW)   input tile
    # emb_ref: (P,            THW)   batch-invariant cos table slice
    # o_ref:   (TB, C_in + P, THW)   output tile
    x = x_ref[...]
    emb = emb_ref[...]
    tb = x.shape[0]
    emb_b = jnp.broadcast_to(emb[None, :, :], (tb,) + emb.shape)
    # One unmasked full-tile store (avoid vst.msk read-modify-write at the
    # c_in sublane boundary).
    o_ref[...] = jnp.concatenate([x, emb_b], axis=1)


def _target_block_bytes():
    # ~4 MiB steps on v7x (3.2 TB/s HBM amortizes the ~0.35us/step cost only
    # with bigger blocks; 64 MiB VMEM still has plenty of room), ~2 MiB on
    # v5e/v6e.
    try:
        info = pltpu.get_tpu_info()
        vmem = getattr(info, "vmem_capacity_bytes", 128 << 20)
        if vmem <= (64 << 20):
            return 4 << 20
    except Exception:
        pass
    return 2 << 20


def positional_encoding_permute_2d(x, channels):
    """x: (B, C, H, W) -> (B, C + channels, H, W)"""
    B, C, H, W = x.shape
    P = int(channels)
    c_out = C + P
    hw = H * W
    db = jnp.dtype(x.dtype).itemsize

    # Hoisted positional-encoding table (batch- and W-invariant), built once
    # outside the kernel. emb[c, i*W + j] = cos(pi * 2^c * i / H).
    pos = jnp.arange(H, dtype=jnp.float32) * jnp.float32(1.0 / H)   # mul, not div
    freq = jnp.float32(math.pi) * jnp.exp2(jnp.arange(P, dtype=jnp.float32))
    emb_h = jnp.cos(freq[:, None] * pos[None, :])                   # (P, H)
    emb = jnp.broadcast_to(emb_h[:, :, None], (P, H, W)).reshape(P, hw)
    emb = emb.astype(x.dtype)                                       # (P, H*W)

    x_flat = x.reshape(B, C, hw)                                    # free reshape

    target = _target_block_bytes()

    # Spatial tile: largest multiple of 128 (<= hw) under the per-step budget;
    # ragged last block via cdiv (legal: last-dim block is a multiple of 128).
    if hw <= 128:
        thw = hw                                                    # full extent
    else:
        bytes_per_elem = (C + c_out + P) * db                       # in + out + emb, tb=1
        max_elems = max(128, target // bytes_per_elem)
        thw = min((hw // 128) * 128, (max_elems // 128) * 128)
        thw = max(thw, 128)

    # Batch tile: budget counts the in AND out slabs (the pipeline
    # double-buffers both), not just the output.
    per_batch = (C + c_out) * thw * db
    tb = max(1, min(B, target // max(1, per_batch)))

    grid_s = pl.cdiv(hw, thw)
    grid_b = pl.cdiv(B, tb)

    # v7x has 2 TensorCores: make sure even a tiny problem has >= 2 parallel
    # grid steps to shard.
    if grid_s * grid_b == 1:
        if B >= 2:
            tb = (B + 1) // 2
            grid_b = pl.cdiv(B, tb)
        elif hw % 128 == 0 and hw >= 256:
            thw = max(128, ((hw // 2) // 128) * 128)
            grid_s = pl.cdiv(hw, thw)

    # vmem_limit sized to the real double-buffered working set (+ margin),
    # instead of a blanket 48 MiB that would eat 75% of v7x's physical VMEM.
    in_block = tb * C * thw * db
    out_block = tb * c_out * thw * db
    emb_block = P * thw * db
    vmem_limit = max(8 << 20,
                     int(2.5 * (in_block + out_block + emb_block)) + (2 << 20))

    # Pure-bandwidth op: read x once, read emb once, write output once.
    bytes_accessed = (B * C + B * c_out + P) * hw * db

    out_flat = pl.pallas_call(
        _pos_enc_kernel,
        out_shape=jax.ShapeDtypeStruct((B, c_out, hw), x.dtype),
        # Spatial axis is the slow grid axis, batch the fast one: the emb
        # block index (0, s) is unchanged across consecutive inner (batch)
        # steps, so Pallas elides the re-fetch and the cos table is DMA'd from
        # HBM exactly once per call (was once per batch tile).
        grid=(grid_s, grid_b),
        in_specs=[
            pl.BlockSpec((tb, C, thw), lambda s, b: (b, 0, s)),
            pl.BlockSpec((P, thw), lambda s, b: (0, s)),
        ],
        out_specs=pl.BlockSpec((tb, c_out, thw), lambda s, b: (b, 0, s)),
        compiler_params=pltpu.CompilerParams(
            dimension_semantics=("parallel", "parallel"),
            vmem_limit_bytes=vmem_limit,
        ),
        cost_estimate=pl.CostEstimate(
            flops=0, transcendentals=0, bytes_accessed=int(bytes_accessed)),
    )(x_flat, emb)

    return out_flat.reshape(B, c_out, H, W)


def _reference(x, channels):
    # Pure-JAX transcription of the PyTorch module for a correctness check.
    B, C, H, W = x.shape
    pos_x = jnp.arange(H, dtype=jnp.float32) / H
    inv_freq = math.pi * (2.0 ** jnp.arange(channels, dtype=jnp.float32))
    emb = jnp.cos(pos_x[:, None] * inv_freq[None, :])               # (H, channels)
    emb = jnp.broadcast_to(emb[None, :, None, :], (B, H, W, channels))
    nhwc = jnp.transpose(x, (0, 2, 3, 1))                           # (B, H, W, C)
    full = jnp.concatenate([nhwc, emb.astype(x.dtype)], axis=-1)
    return jnp.transpose(full, (0, 3, 1, 2))                        # (B, C+ch, H, W)


if __name__ == "__main__":
    key = jax.random.PRNGKey(0)
    B, C, H, W = 2, 4, 16, 16
    channels = 4  # PositionalEncodingPermute2D(channels=4)

    x = jax.random.normal(key, (B, C, H, W), dtype=jnp.float32)

    out = positional_encoding_permute_2d(x, channels)
    out = jax.block_until_ready(out)

    ref = _reference(x, channels)
    assert out.shape == (B, C + channels, H, W), out.shape
    assert jnp.allclose(out, ref, atol=1e-5, rtol=1e-5), "mismatch vs reference"

    print("KERNEL_OK")
</pallas_src>

<mosaic_0001>
module attributes {stable_mosaic.version = 11 : i64} {
  func.func @_pos_enc_kernel(%arg0: i32, %arg1: i32, %arg2: memref<1x4x256xf32, #tpu.memory_space<vmem>>, %arg3: memref<4x256xf32, #tpu.memory_space<vmem>>, %arg4: memref<1x8x256xf32, #tpu.memory_space<vmem>>) attributes {dimension_semantics = [#tpu.dimension_semantics<parallel>, #tpu.dimension_semantics<parallel>], iteration_bounds = array<i64: 1, 2>, scalar_prefetch = 0 : i64, scratch_operands = 0 : i64, tpu.core_type = #tpu.core_type<tc>, window_params = [{transform_indices = @transform_0, window_bounds = array<i64: 1, 4, 256>}, {transform_indices = @transform_1, window_bounds = array<i64: 4, 256>}, {transform_indices = @transform_2, window_bounds = array<i64: 1, 8, 256>}]} {
    %c0 = arith.constant 0 : index
    %c0_0 = arith.constant 0 : index
    %c0_1 = arith.constant 0 : index
    %0 = vector.load %arg2[%c0, %c0_0, %c0_1] : memref<1x4x256xf32, #tpu.memory_space<vmem>>, vector<1x4x256xf32>
    %c0_2 = arith.constant 0 : index
    %c0_3 = arith.constant 0 : index
    %1 = vector.load %arg3[%c0_2, %c0_3] : memref<4x256xf32, #tpu.memory_space<vmem>>, vector<4x256xf32>
    %2 = vector.shape_cast %1 : vector<4x256xf32> to vector<1x4x256xf32>
    %3 = tpu.concatenate %0, %2 in 1 : vector<1x4x256xf32>, vector<1x4x256xf32> -> vector<1x8x256xf32>
    %c0_4 = arith.constant 0 : index
    %c0_5 = arith.constant 0 : index
    %c0_6 = arith.constant 0 : index
    %4 = vector.load %arg4[%c0_4, %c0_5, %c0_6] : memref<1x8x256xf32, #tpu.memory_space<vmem>>, vector<1x8x256xf32>
    tpu.vector_store %arg4[%c0_4, %c0_5, %c0_6], %3 {strides = array<i32>} : memref<1x8x256xf32, #tpu.memory_space<vmem>>, vector<1x8x256xf32>,
    return
  }
  func.func @transform_0(%arg0: i32, %arg1: i32) -> (i32, i32, i32) {
    %c0_i32 = arith.constant 0 : i32
    %c0_i32_0 = arith.constant 0 : i32
    return %arg1, %c0_i32, %arg0 : i32, i32, i32
  }
  func.func @transform_1(%arg0: i32, %arg1: i32) -> (i32, i32) {
    %c0_i32 = arith.constant 0 : i32
    %c0_i32_0 = arith.constant 0 : i32
    return %c0_i32, %arg0 : i32, i32
  }
  func.func @transform_2(%arg0: i32, %arg1: i32) -> (i32, i32, i32) {
    %c0_i32 = arith.constant 0 : i32
    %c0_i32_0 = arith.constant 0 : i32
    return %arg1, %c0_i32, %arg0 : i32, i32, i32
  }
}

</mosaic_0001>

<llo_original>
// kernel: tpu_custom_call.1
$region0: #{tpu_custom_call.1}
  #allocation0 [shape = 'u32[]', space=smem, size = 0x4, offset = 0x4, fixed_abs, tag = 'smem constant byte address 0x4 - core index']
  #allocation1 [shape = 'u32[144,128]{1,0:T(1,128)}', space=vmem, size = 0x12000, scoped, tag = 'internal scratch']
  %s0 = inlined_call_operand.hbm [shape: f32[2,4,256], index: 0, kind: input, shape index: {}]
  %s1 = inlined_call_operand.hbm [shape: f32[4,256], index: 1, kind: input, shape index: {}]
  %s2 = inlined_call_operand.hbm [shape: f32[2,8,256], index: 2, kind: output, shape index: {}]
  %s3 = sld [smem:[#allocation0]]
  $region49: #{tpu_custom_call.1} parent=0
    _
  %s5 = ssub.s32 1, %s3
  %s6 = scalar_select 0, %s5, %s3
  $region1: #{tpu_custom_call.1} parent=0
    #allocation2 [shape = 'u8[8192]{0}', space=vmem, size = 0x2000, scoped, tag = 'input window, operand 0']
    #allocation3 [shape = 's32[2]{0}', space=sflag, size = 0x8, scoped, tag = 'scoped memory for tpu_custom_call.1']
    #allocation4 [shape = 's32[2]{0}', space=sflag, size = 0x8, scoped, tag = 'scoped memory for tpu_custom_call.1']
    #allocation5 [shape = 'u8[4096]{0}', space=vmem, size = 0x1000, scoped, tag = 'input window, operand 1, single buffered']
    #allocation6 [shape = 's32[1]{0}', space=sflag, size = 0x4, scoped, tag = 'scoped memory for tpu_custom_call.1']
    #allocation7 [shape = 'u8[16384]{0}', space=vmem, size = 0x4000, scoped, tag = 'output window, operand 0']
    %7 = vsyncpa [#allocation3], 0
    %s8 = scalar_lea.sflag [#allocation3], 1
    %9 = vsyncpa %s8, 0
    %10 = vsyncpa [#allocation6], 0
    %11 = vsyncpa [#allocation4], 0
    %s12 = scalar_lea.sflag [#allocation4], 1
    %13 = vsyncpa %s12, 0
    loop: start=0, step=1, limit=4
    $region2: #{tpu_custom_call.1} parent=1 // loop_pre_header
      _
    $region3: #{tpu_custom_call.1} parent=1 // loop_header
      %s15 = sphi 0, %s19
      %p16 = scmp.ge.s32.totalorder %s15, 4
      %s22 = sphi 0, %s34
      %s23 = sphi 0, %s30
      %s24 = sphi 0, %s22
      %s25 = sphi 0, %s23
      %s26 = sphi 0, %s24
      %s27 = sphi 0, %s25
      %s39 = sphi 0, %s41
      %s42 = sphi 0, %s39
      %s43 = sphi 0, %s42
      %s59 = sphi 0, %s43
      %s65 = sphi 0, %s67
      %s68 = sphi 0, %s65
      %s69 = sphi 0, %s68
      %s85 = sphi 0, %s69
      %s93 = sphi 0, %s95
      %s96 = sphi 0, %s93
      %s97 = sphi 0, %s96
      %s113 = sphi 0, %s97
    $region4: #{tpu_custom_call.1} parent=1 // loop_header_branch
      %18 = sbr.rel (%p16) target = $region8
    $region5: #{tpu_custom_call.1} parent=1 // loop_body
      %s20 = ssub.s32 %s15, 1
      %s21 = ssub.s32 %s15, 2
      %s28 = sadd.s32 1, %s23
      %p29 = scmp.ge.s32.totalorder %s28, 2
      %s30 = scalar_select %p29, 0, %s28
      %s31 = sadd.s32 1, %s22
      %s32 = scalar_select %p29, %s31, %s22
      %p33 = scmp.ge.s32.totalorder %s32, 1
      %s34 = scalar_select %p33, 0, %s32
      %s35 = ssub.s32 %s23, %s30
      %s36 = ssub.s32 %s22, %s34
      %s37 = sor.u32 %s35, %s36
      %p38 = scmp.eq.s32.totalorder %s37, 0
      %s40 = sadd.s32 %s39, 1
      %s41 = scalar_select %p38, %s39, %s40
      %p44 = pneg %p38
      %p45 = scmp.eq.s32.totalorder %s15, 1
      %p46 = por %p44, %p45
      %p47 = scmp.ne.s32.totalorder %s39, %s42
      %p48 = scmp.eq.s32.totalorder %s15, 0
      %p49 = por %p47, %p48
      %p50 = scmp.ne.s32.totalorder %s39, %s42
      %p51 = scmp.eq.s32.totalorder %s20, 1
      %p52 = por %p50, %p51
      %p53 = scmp.ne.s32.totalorder %s42, %s43
      %p54 = scmp.eq.s32.totalorder %s20, 0
      %p55 = por %p53, %p54
      %p56 = scmp.ne.s32.totalorder %s42, %s43
      %p57 = scmp.eq.s32.totalorder %s21, 1
      %p58 = por %p56, %p57
      %p60 = scmp.ne.s32.totalorder %s43, %s59
      %p61 = scmp.eq.s32.totalorder %s21, 0
      %p62 = por %p60, %p61
      %s63 = ssub.s32 %s22, %s34
      %p64 = scmp.eq.s32.totalorder %s63, 0
      %s66 = sadd.s32 %s65, 1
      %s67 = scalar_select %p64, %s65, %s66
      %p70 = pneg %p64
      %p71 = scmp.eq.s32.totalorder %s15, 1
      %p72 = por %p70, %p71
      %p73 = scmp.ne.s32.totalorder %s65, %s68
      %p74 = scmp.eq.s32.totalorder %s15, 0
      %p75 = por %p73, %p74
      %p76 = scmp.ne.s32.totalorder %s65, %s68
      %p77 = scmp.eq.s32.totalorder %s20, 1
      %p78 = por %p76, %p77
      %p79 = scmp.ne.s32.totalorder %s68, %s69
      %p80 = scmp.eq.s32.totalorder %s20, 0
      %p81 = por %p79, %p80
      %p82 = scmp.ne.s32.totalorder %s68, %s69
      %p83 = scmp.eq.s32.totalorder %s21, 1
      %p84 = por %p82, %p83
      %p86 = scmp.ne.s32.totalorder %s69, %s85
      %p87 = scmp.eq.s32.totalorder %s21, 0
      %p88 = por %p86, %p87
      %s89 = ssub.s32 %s23, %s30
      %s90 = ssub.s32 %s22, %s34
      %s91 = sor.u32 %s89, %s90
      %p92 = scmp.eq.s32.totalorder %s91, 0
      %s94 = sadd.s32 %s93, 1
      %s95 = scalar_select %p92, %s93, %s94
      %p98 = pneg %p92
      %p99 = scmp.eq.s32.totalorder %s15, 1
      %p100 = por %p98, %p99
      %p101 = scmp.ne.s32.totalorder %s93, %s96
      %p102 = scmp.eq.s32.totalorder %s15, 0
      %p103 = por %p101, %p102
      %p104 = scmp.ne.s32.totalorder %s93, %s96
      %p105 = scmp.eq.s32.totalorder %s20, 1
      %p106 = por %p104, %p105
      %p107 = scmp.ne.s32.totalorder %s96, %s97
      %p108 = scmp.eq.s32.totalorder %s20, 0
      %p109 = por %p107, %p108
      %p110 = scmp.ne.s32.totalorder %s96, %s97
      %p111 = scmp.eq.s32.totalorder %s21, 1
      %p112 = por %p110, %p111
      %p114 = scmp.ne.s32.totalorder %s97, %s113
      %p115 = scmp.eq.s32.totalorder %s21, 0
      %p116 = por %p114, %p115
      %p117 = scmp.le.s32.totalorder 1, %s15
      %p118 = scmp.lt.s32.totalorder %s15, 3
      %p119 = pnand %p117, %p118
      %p120 = pneg %p119
      // Predicated region
      $region9: #{tpu_custom_call.1} parent=5 // pred_check
        _
      $region10: #{tpu_custom_call.1} parent=5 // pred_check_branch
        %122 = sbr.rel (%p119) target = $region12
      $region11: #{tpu_custom_call.1} parent=5 // pred_region
        %s123 = ssub.s32 %s15, 1
        // Predicated region
        $region13: #{tpu_custom_call.1} parent=11 // pred_check
          %p124 = pneg %p81
        $region14: #{tpu_custom_call.1} parent=11 // pred_check_branch
          %126 = sbr.rel (%p124) target = $region16
        $region15: #{tpu_custom_call.1} parent=11 // pred_region
          %s127 = smul.u32 2, %s24
          %s129 = ssub.s32 128, 128
          %130 = vsyncadd [#allocation6], %s129
          %s131 = smul.addr %s127, 64
          %s132 = scalar_lea.hbm %s1, %s131
          %s134 = sshll.u32 [#allocation5], 4
          %s135 = int_to_ptr.vmem [resolvable:$true] %s134
          %137 = dma.hbm_to_vmem [thread:$0]  %s132, 128, %s135, [#allocation6]
        $region16: #{tpu_custom_call.1} parent=11 // pred_fallthru
          _
      $region12: #{tpu_custom_call.1} parent=5 // pred_fallthru
        _
      %p138 = scmp.lt.s32.totalorder %s15, 2
      // Predicated region
      $region17: #{tpu_custom_call.1} parent=5 // pred_check
        %p139 = pneg %p138
      $region18: #{tpu_custom_call.1} parent=5 // pred_check_branch
        %141 = sbr.rel (%p139) target = $region20
      $region19: #{tpu_custom_call.1} parent=5 // pred_region
        // Predicated region
        $region21: #{tpu_custom_call.1} parent=19 // pred_check
          %p142 = pneg %p49
        $region22: #{tpu_custom_call.1} parent=19 // pred_check_branch
          %144 = sbr.rel (%p142) target = $region24
        $region23: #{tpu_custom_call.1} parent=19 // pred_region
          %s145 = sand.u32 %s39, 1
          %s146 = scalar_lea.sflag [#allocation3], %s145
          %s147 = sand.u32 %s39, 1
          %s148 = smul.addr %s147, 8
          %s149 = scalar_lea.vmem [#allocation2], %s148
          %s150 = smul.u32 2, %s22
          %s152 = ssub.s32 128, 128
          %153 = vsyncadd %s146, %s152
          %s154 = smul.addr %s23, 2
          %s155 = sadd.s32 %s150, %s154
          %s156 = smul.addr %s155, 64
          %s157 = scalar_lea.hbm %s0, %s156
          %s159 = sshll.u32 %s149, 4
          %s160 = int_to_ptr.vmem [resolvable:$true] %s159
          %162 = dma.hbm_to_vmem [thread:$0]  %s157, 128, %s160, %s146
        $region24: #{tpu_custom_call.1} parent=19 // pred_fallthru
          _
      $region20: #{tpu_custom_call.1} parent=5 // pred_fallthru
        _
      %p163 = scmp.le.s32.totalorder 1, %s15
      %p164 = scmp.lt.s32.totalorder %s15, 3
      %p165 = pnand %p163, %p164
      %p166 = pneg %p165
      // Predicated region
      $region25: #{tpu_custom_call.1} parent=5 // pred_check
        _
      $region26: #{tpu_custom_call.1} parent=5 // pred_check_branch
        %168 = sbr.rel (%p165) target = $region28
      $region27: #{tpu_custom_call.1} parent=5 // pred_region
        %s169 = ssub.s32 %s15, 1
        %s170 = sand.u32 %s42, 1
        %s171 = scalar_lea.sflag [#allocation3], %s170
        %s172 = sand.u32 %s42, 1
        %s173 = smul.addr %s172, 8
        %s174 = scalar_lea.vmem [#allocation2], %s173
        // Predicated region
        $region29: #{tpu_custom_call.1} parent=27 // pred_check
          %p175 = pneg %p55
        $region30: #{tpu_custom_call.1} parent=27 // pred_check_branch
          %177 = sbr.rel (%p175) target = $region32
        $region31: #{tpu_custom_call.1} parent=27 // pred_region
          %178 = dma.done %s171, 128
        $region32: #{tpu_custom_call.1} parent=27 // pred_fallthru
          _
        // Predicated region
        $region33: #{tpu_custom_call.1} parent=27 // pred_check
          %p179 = pneg %p81
        $region34: #{tpu_custom_call.1} parent=27 // pred_check_branch
          %181 = sbr.rel (%p179) target = $region36
        $region35: #{tpu_custom_call.1} parent=27 // pred_region
          %182 = dma.done [#allocation6], 128
        $region36: #{tpu_custom_call.1} parent=27 // pred_fallthru
          _
        %s183 = sand.u32 %s42, 1
        %s184 = scalar_lea.sflag [#allocation3], %s183
        %s185 = sand.u32 %s42, 1
        %s186 = smul.addr %s185, 8
        %s187 = scalar_lea.vmem [#allocation2], %s186
        %p188 = pneg %p55
        %p189 = pneg %p52
        %p190 = pneg %p81
        %p191 = pneg %p78
        %p192 = pneg %p109
        %p193 = pneg %p106
        %s194 = sand.u32 %s96, 1
        %s195 = scalar_lea.sflag [#allocation4], %s194
        %s196 = sand.u32 %s96, 1
        %s197 = smul.addr %s196, 16
        %s198 = scalar_lea.vmem [#allocation7], %s197
        %s199 = smul.u32 2, %s24
        %s200 = smul.u32 2, %s24
        %s201 = smul.u32 2, %s24
        %v202 = vld [vmem:[%s174] sm:$0xff]
        %v203 = vld [vmem:[#allocation5] sm:$0xff]
        %v205 = vcombine.high %v202, %v202
        %v208 = vcombine.low %v203, %v203
        %vm210 = vcmask 1043456
        %v211 = vsel %vm210, %v202, %v208
        %v212 = vsel %vm210, %v205, %v203
        %213 = vst [vmem:[%s198] sm:$0xff] %v211
        %214 = vst [vmem:[%s198 + $0x8] sm:$0xff] %v212
        %s215 = sand.u32 %s96, 1
        %s216 = scalar_lea.sflag [#allocation4], %s215
        %s217 = sand.u32 %s96, 1
        %s218 = smul.addr %s217, 16
        %s219 = scalar_lea.vmem [#allocation7], %s218
        // Predicated region
        $region37: #{tpu_custom_call.1} parent=27 // pred_check
          %p220 = pneg %p106
        $region38: #{tpu_custom_call.1} parent=27 // pred_check_branch
          %222 = sbr.rel (%p220) target = $region40
        $region39: #{tpu_custom_call.1} parent=27 // pred_region
          %s223 = smul.u32 2, %s24
          %s225 = ssub.s32 256, 256
          %226 = vsyncadd %s216, %s225
          %s227 = smul.addr %s25, 2
          %s228 = sadd.s32 %s223, %s227
          %s229 = smul.addr %s228, 128
          %s230 = scalar_lea.hbm %s2, %s229
          %s232 = sshll.u32 %s219, 4
          %s233 = int_to_ptr.vmem [resolvable:$true] %s232
          %235 = dma.vmem_to_hbm [thread:$0]  %s233, 256, %s230, %s216
        $region40: #{tpu_custom_call.1} parent=27 // pred_fallthru
          _
      $region28: #{tpu_custom_call.1} parent=5 // pred_fallthru
        _
      %p236 = scmp.le.s32.totalorder 2, %s15
      // Predicated region
      $region41: #{tpu_custom_call.1} parent=5 // pred_check
        %p237 = pneg %p236
      $region42: #{tpu_custom_call.1} parent=5 // pred_check_branch
        %239 = sbr.rel (%p237) target = $region44
      $region43: #{tpu_custom_call.1} parent=5 // pred_region
        %s240 = ssub.s32 %s15, 2
        // Predicated region
        $region45: #{tpu_custom_call.1} parent=43 // pred_check
          %p241 = pneg %p112
        $region46: #{tpu_custom_call.1} parent=43 // pred_check_branch
          %243 = sbr.rel (%p241) target = $region48
        $region47: #{tpu_custom_call.1} parent=43 // pred_region
          %s244 = sand.u32 %s97, 1
          %s245 = scalar_lea.sflag [#allocation4], %s244
          %s246 = sand.u32 %s97, 1
          %s247 = smul.addr %s246, 16
          %s248 = scalar_lea.vmem [#allocation7], %s247
          %249 = dma.done %s245, 256
        $region48: #{tpu_custom_call.1} parent=43 // pred_fallthru
          _
      $region44: #{tpu_custom_call.1} parent=5 // pred_fallthru
        _
    $region6: #{tpu_custom_call.1} parent=1 // loop_footer
      %s19 = sadd.s32 1, %s15
    $region7: #{tpu_custom_call.1} parent=1 // loop_footer_branch
      %14 = sbr.rel target = $region3
    $region8: #{tpu_custom_call.1} parent=1 // loop_exit
      _
    %250 = vsyncpa [#allocation3], 1
    %s251 = scalar_lea.sflag [#allocation3], 1
    %252 = vsyncpa %s251, 1
    %253 = vsyncpa [#allocation6], 1
    %254 = vsyncpa [#allocation4], 1
    %s255 = scalar_lea.sflag [#allocation4], 1
    %256 = vsyncpa %s255, 1

</llo_original>
